<compile_context>
chip_gen: v5e
topology: v5e:2x2
jax: 0.10.0
libtpu: 0.0.40
codegen_flags: <defaults>
</compile_context>

<pallas_src>
import numpy as np
import jax
import jax.numpy as jnp
from jax.experimental import pallas as pl
from jax.experimental.pallas import tpu as pltpu


# ---------------------------------------------------------------------------
# Fused light.build_mips(): the whole mip chain in ONE pallas_call.
# ---------------------------------------------------------------------------
def _bitrev_perm(n: int) -> np.ndarray:
    """Bit-reversal permutation of range(n) (n a power of two). Involution."""
    bits = max(int(np.log2(n)), 0)
    idx = np.arange(n)
    rev = np.zeros(n, dtype=np.int32)
    for b in range(bits):
        rev |= ((idx >> b) & 1) << (bits - 1 - b)
    return rev


def _make_mips_kernel(num_levels, rows_per_level):
    """Kernel refs = (slab, pw_1..pw_L, out_1..out_L)."""

    def kernel(*refs):
        slab_ref = refs[0]
        pw_refs = refs[1:1 + num_levels]
        out_refs = refs[1 + num_levels:]
        src = slab_ref
        for lvl in range(num_levels):
            half = rows_per_level[lvl + 1]          # rows of the next level
            # Row (H) pairs: bit-reversed row storage makes the pair reduction a
            # contiguous first-half + second-half VPU add.
            top = src[0:half, :].astype(jnp.float32)
            bot = src[half:2 * half, :].astype(jnp.float32)
            # Column (W) pairs: lane mixing via a tiny pre-transposed,
            # 0.25-weighted pooling matrix (one small MXU matmul per level).
            pooled = jnp.dot(top + bot, pw_refs[lvl][...],
                             preferred_element_type=jnp.float32)
            out_refs[lvl][...] = pooled.astype(out_refs[lvl].dtype)
            # Next level reads the previous level straight out of its VMEM
            # output ref -- no HBM round trip between levels.
            src = out_refs[lvl]

    return kernel


def build_mips(base, min_res=4):
    """light.build_mips(): mip chain [base, mip1, ...] down to min_res x min_res.

    base: [F, C, H, W] cubemap (any NHWC->NCHW conversion must happen outside
    this hot path).  NOTE: plain per-face 2x2 averaging; nvdiffrec's
    cubemap-aware filtering across face edges is not reproduced.
    """
    F, C, H, W = base.shape
    sizes = [(H, W)]
    while sizes[-1][-1] > min_res:
        sizes.append((sizes[-1][0] // 2, sizes[-1][1] // 2))
    num_levels = len(sizes) - 1
    if num_levels == 0:
        return [base]

    FC = F * C
    rows = [h * FC for h, _ in sizes]               # slab rows per level

    # --- wrapper-side layout plumbing (outside the kernel) -----------------
    # 2-D slab [H*F*C, W]: W on the lane dim; rows H-major / (face,channel)-minor
    # with the H axis bit-reversal ordered (see kernel).
    slab = jnp.transpose(base, (2, 0, 1, 3))[_bitrev_perm(H)].reshape(rows[0], W)

    # Pre-transposed 0.25-weighted column-pooling matrices, one per level.
    pws = [0.25 * jnp.repeat(jnp.eye(w // 2, dtype=jnp.float32), 2, axis=0)
           for _, w in sizes[:-1]]                  # shapes (W_l, W_l // 2)

    out_shape = tuple(
        jax.ShapeDtypeStruct((rows[l + 1], sizes[l + 1][1]), base.dtype)
        for l in range(num_levels))

    def full_spec(shape):
        nd = len(shape)
        return pl.BlockSpec(tuple(shape), lambda i, nd=nd: (0,) * nd)

    # Single fused grid step: the whole chain stays VMEM-resident (~KiB here).
    # For production env maps (512^2+ per face) tile per face and/or raise
    # vmem_limit_bytes via pltpu.CompilerParams; v7x only has 64 MiB VMEM.
    outs = pl.pallas_call(
        _make_mips_kernel(num_levels, rows),
        out_shape=out_shape,
        grid=(1,),
        in_specs=[full_spec(slab.shape)] + [full_spec(p.shape) for p in pws],
        out_specs=tuple(full_spec(s.shape) for s in out_shape),
        compiler_params=pltpu.CompilerParams(
            dimension_semantics=("arbitrary",)),
    )(slab, *pws)

    # Undo the wrapper-side layout per level (bit-reversal is its own inverse).
    mips = [base]
    for lvl in range(num_levels):
        h_l, w_l = sizes[lvl + 1]
        m = outs[lvl].reshape(h_l, F, C, w_l)[_bitrev_perm(h_l)]
        mips.append(jnp.transpose(m, (1, 2, 0, 3)))
    return mips


# ---------------------------------------------------------------------------
# light.xfm(mv): rotate light-space direction vectors by the camera rotation.
# ---------------------------------------------------------------------------
def light_xfm(dirs, mv):
    # Deliberately plain jnp (per perf review): a (N,3)@(3,3) product is ~1 kFLOP;
    # a pallas_call would be pure launch/DMA overhead.  Fold it into a downstream
    # shading kernel if/when one exists.
    rot = mv[:3, :3]
    # Row-vector convention: out = dirs @ rot^T.  Pure-rotation mv assumed; with
    # scale/shear the inverse-transpose would be required.
    return dirs @ rot.T


# ---------------------------------------------------------------------------
# Trainer.forward equivalent (optimize_light=True, camera_space_light=True).
# ---------------------------------------------------------------------------
def trainer_forward(light_base, light_dirs, target_mv):
    mips = build_mips(light_base)                      # 1) self.light.build_mips()
    xformed_dirs = light_xfm(light_dirs, target_mv)    # 2) self.light.xfm(target['mv'])
    # 3) self.geometry.tick(self.glctx, target, self.light, self.material, ...)
    # TODO(synk): nvdiffrast rasterization + material shading + SDS image loss;
    # external CUDA renderer, no Pallas equivalent.
    return mips, xformed_dirs  # PyTorch forward returns None; artifacts kept for checks.


if __name__ == "__main__":
    key = jax.random.PRNGKey(0)
    k1, k2, k3 = jax.random.split(key, 3)

    # Deterministic synthetic inputs (small shapes).
    light_base = jax.random.uniform(k1, (6, 3, 16, 16), dtype=jnp.float32)   # env cubemap
    light_dirs = jax.random.normal(k2, (64, 3), dtype=jnp.float32)           # light-space dirs
    mv = jnp.eye(4, dtype=jnp.float32) + 0.01 * jax.random.normal(
        k3, (4, 4), dtype=jnp.float32)                                       # target['mv']

    mips, xdirs = trainer_forward(light_base, light_dirs, mv)
    jax.block_until_ready(mips)
    jax.block_until_ready(xdirs)

    # Correctness checks against plain-JAX references.
    ref_mip1 = light_base.reshape(6, 3, 8, 2, 8, 2).mean(axis=(3, 5))
    ref_mip2 = ref_mip1.reshape(6, 3, 4, 2, 4, 2).mean(axis=(3, 5))
    assert len(mips) == 3
    assert jnp.allclose(mips[1], ref_mip1, atol=1e-5)
    assert jnp.allclose(mips[2], ref_mip2, atol=1e-5)
    assert jnp.allclose(xdirs, light_dirs @ mv[:3, :3].T, atol=1e-5)

    print("KERNEL_OK")
</pallas_src>

<mosaic_0001>
module attributes {stable_mosaic.version = 11 : i64} {
  func.func @kernel(%arg0: i32, %arg1: memref<288x16xf32, #tpu.memory_space<vmem>>, %arg2: memref<16x8xf32, #tpu.memory_space<vmem>>, %arg3: memref<8x4xf32, #tpu.memory_space<vmem>>, %arg4: memref<144x8xf32, #tpu.memory_space<vmem>>, %arg5: memref<72x4xf32, #tpu.memory_space<vmem>>) attributes {dimension_semantics = [#tpu.dimension_semantics<arbitrary>], iteration_bounds = array<i64: 1>, scalar_prefetch = 0 : i64, scratch_operands = 0 : i64, tpu.core_type = #tpu.core_type<tc>, window_params = [{pipeline_mode = #tpu.pipeline_mode<synchronous>, transform_indices = @transform_0, window_bounds = array<i64: 288, 16>}, {pipeline_mode = #tpu.pipeline_mode<synchronous>, transform_indices = @transform_1, window_bounds = array<i64: 16, 8>}, {pipeline_mode = #tpu.pipeline_mode<synchronous>, transform_indices = @transform_2, window_bounds = array<i64: 8, 4>}, {pipeline_mode = #tpu.pipeline_mode<synchronous>, transform_indices = @transform_3, window_bounds = array<i64: 144, 8>}, {pipeline_mode = #tpu.pipeline_mode<synchronous>, transform_indices = @transform_4, window_bounds = array<i64: 72, 4>}]} {
    %c0 = arith.constant 0 : index
    %c0_0 = arith.constant 0 : index
    %0 = vector.load %arg1[%c0, %c0_0] : memref<288x16xf32, #tpu.memory_space<vmem>>, vector<144x16xf32>
    %c144 = arith.constant 144 : index
    %c0_1 = arith.constant 0 : index
    %1 = vector.load %arg1[%c144, %c0_1] : memref<288x16xf32, #tpu.memory_space<vmem>>, vector<144x16xf32>
    %2 = arith.addf %0, %1 : vector<144x16xf32>
    %c0_2 = arith.constant 0 : index
    %c0_3 = arith.constant 0 : index
    %3 = vector.load %arg2[%c0_2, %c0_3] : memref<16x8xf32, #tpu.memory_space<vmem>>, vector<16x8xf32>
    %cst = arith.constant dense<0.000000e+00> : vector<144x8xf32>
    %4 = tpu.matmul %2, %3, %cst {dimension_numbers = #tpu.dot_dimension_numbers<[1], [0], [0], [1], [0, 0, 1, 1], [], []>} : vector<144x16xf32>, vector<16x8xf32>, vector<144x8xf32> -> vector<144x8xf32>
    %c0_4 = arith.constant 0 : index
    %c0_5 = arith.constant 0 : index
    %5 = vector.load %arg4[%c0_4, %c0_5] : memref<144x8xf32, #tpu.memory_space<vmem>>, vector<144x8xf32>
    tpu.vector_store %arg4[%c0_4, %c0_5], %4 {strides = array<i32>} : memref<144x8xf32, #tpu.memory_space<vmem>>, vector<144x8xf32>,
    %c0_6 = arith.constant 0 : index
    %c0_7 = arith.constant 0 : index
    %6 = vector.load %arg4[%c0_6, %c0_7] : memref<144x8xf32, #tpu.memory_space<vmem>>, vector<72x8xf32>
    %c72 = arith.constant 72 : index
    %c0_8 = arith.constant 0 : index
    %7 = vector.load %arg4[%c72, %c0_8] : memref<144x8xf32, #tpu.memory_space<vmem>>, vector<72x8xf32>
    %8 = arith.addf %6, %7 : vector<72x8xf32>
    %c0_9 = arith.constant 0 : index
    %c0_10 = arith.constant 0 : index
    %9 = vector.load %arg3[%c0_9, %c0_10] : memref<8x4xf32, #tpu.memory_space<vmem>>, vector<8x4xf32>
    %cst_11 = arith.constant dense<0.000000e+00> : vector<72x4xf32>
    %10 = tpu.matmul %8, %9, %cst_11 {dimension_numbers = #tpu.dot_dimension_numbers<[1], [0], [0], [1], [0, 0, 1, 1], [], []>} : vector<72x8xf32>, vector<8x4xf32>, vector<72x4xf32> -> vector<72x4xf32>
    %c0_12 = arith.constant 0 : index
    %c0_13 = arith.constant 0 : index
    %11 = vector.load %arg5[%c0_12, %c0_13] : memref<72x4xf32, #tpu.memory_space<vmem>>, vector<72x4xf32>
    tpu.vector_store %arg5[%c0_12, %c0_13], %10 {strides = array<i32>} : memref<72x4xf32, #tpu.memory_space<vmem>>, vector<72x4xf32>,
    return
  }
  func.func @transform_0(%arg0: i32) -> (i32, i32) {
    %c0_i32 = arith.constant 0 : i32
    %c0_i32_0 = arith.constant 0 : i32
    %c0_i32_1 = arith.constant 0 : i32
    return %c0_i32, %c0_i32_0 : i32, i32
  }
  func.func @transform_1(%arg0: i32) -> (i32, i32) {
    %c0_i32 = arith.constant 0 : i32
    %c0_i32_0 = arith.constant 0 : i32
    %c0_i32_1 = arith.constant 0 : i32
    return %c0_i32, %c0_i32_0 : i32, i32
  }
  func.func @transform_2(%arg0: i32) -> (i32, i32) {
    %c0_i32 = arith.constant 0 : i32
    %c0_i32_0 = arith.constant 0 : i32
    %c0_i32_1 = arith.constant 0 : i32
    return %c0_i32, %c0_i32_0 : i32, i32
  }
  func.func @transform_3(%arg0: i32) -> (i32, i32) {
    %c0_i32 = arith.constant 0 : i32
    %c0_i32_0 = arith.constant 0 : i32
    %c0_i32_1 = arith.constant 0 : i32
    return %c0_i32, %c0_i32_0 : i32, i32
  }
  func.func @transform_4(%arg0: i32) -> (i32, i32) {
    %c0_i32 = arith.constant 0 : i32
    %c0_i32_0 = arith.constant 0 : i32
    %c0_i32_1 = arith.constant 0 : i32
    return %c0_i32, %c0_i32_0 : i32, i32
  }
}

</mosaic_0001>

<llo_original>
// kernel: tpu_custom_call.1
$region0: #{tpu_custom_call.1}
  #allocation0 [shape = 'u32[]', space=smem, size = 0x4, offset = 0x4, fixed_abs, tag = 'smem constant byte address 0x4 - core index']
  #allocation1 [shape = 'u32[72,128]{1,0:T(1,128)}', space=vmem, size = 0x9000, scoped, tag = 'internal scratch']
  %s0 = inlined_call_operand.vmem [shape: f32[288,16], index: 0, kind: input, shape index: {}]
  %s1 = inlined_call_operand.vmem [shape: f32[16,8], index: 1, kind: input, shape index: {}]
  %s2 = inlined_call_operand.vmem [shape: f32[8,4], index: 2, kind: input, shape index: {}]
  %s3 = inlined_call_operand.vmem [shape: f32[144,8], index: 3, kind: output, shape index: {0}]
  %s4 = inlined_call_operand.vmem [shape: f32[72,4], index: 4, kind: output, shape index: {1}]
  %5 = xla_tuple %s3, %s4
  %s6 = sld [smem:[#allocation0]]
  $region30: #{tpu_custom_call.1} parent=0
    _
  %s8 = ssub.s32 1, %s6
  %s9 = scalar_select 0, %s8, %s6
  // Predicated region
  $region2: #{tpu_custom_call.1} parent=0 // pred_check
    _
  $region3: #{tpu_custom_call.1} parent=0 // pred_check_branch
    %11 = sbr.rel (0) target = $region5
  $region4: #{tpu_custom_call.1} parent=0 // pred_region
    _
  $region5: #{tpu_custom_call.1} parent=0 // pred_fallthru
    _
  // Predicated region
  $region6: #{tpu_custom_call.1} parent=0 // pred_check
    _
  $region7: #{tpu_custom_call.1} parent=0 // pred_check_branch
    %13 = sbr.rel (0) target = $region9
  $region8: #{tpu_custom_call.1} parent=0 // pred_region
    _
  $region9: #{tpu_custom_call.1} parent=0 // pred_fallthru
    _
  // Predicated region
  $region10: #{tpu_custom_call.1} parent=0 // pred_check
    _
  $region11: #{tpu_custom_call.1} parent=0 // pred_check_branch
    %15 = sbr.rel (0) target = $region13
  $region12: #{tpu_custom_call.1} parent=0 // pred_region
    _
  $region13: #{tpu_custom_call.1} parent=0 // pred_fallthru
    _
  %v16 = vld [vmem:[%s0] sm:$0xff]
  %v17 = vld [vmem:[%s0 + $0x8] sm:$0xff]
  %v18 = vld [vmem:[%s0 + $0x10] sm:$0xff]
  %v19 = vld [vmem:[%s0 + $0x18] sm:$0xff]
  %v20 = vld [vmem:[%s0 + $0x20] sm:$0xff]
  %v21 = vld [vmem:[%s0 + $0x28] sm:$0xff]
  %v22 = vld [vmem:[%s0 + $0x30] sm:$0xff]
  %v23 = vld [vmem:[%s0 + $0x38] sm:$0xff]
  %v24 = vld [vmem:[%s0 + $0x40] sm:$0xff]
  %v25 = vld [vmem:[%s0 + $0x48] sm:$0xff]
  %v26 = vld [vmem:[%s0 + $0x50] sm:$0xff]
  %v27 = vld [vmem:[%s0 + $0x58] sm:$0xff]
  %v28 = vld [vmem:[%s0 + $0x60] sm:$0xff]
  %v29 = vld [vmem:[%s0 + $0x68] sm:$0xff]
  %v30 = vld [vmem:[%s0 + $0x70] sm:$0xff]
  %v31 = vld [vmem:[%s0 + $0x78] sm:$0xff]
  %v32 = vld [vmem:[%s0 + $0x80] sm:$0xff]
  %v33 = vld [vmem:[%s0 + $0x88] sm:$0xff]
  %v34 = vld [vmem:[%s0 + $0x90] sm:$0xff]
  %v35 = vld [vmem:[%s0 + $0x98] sm:$0xff]
  %v36 = vld [vmem:[%s0 + $0xa0] sm:$0xff]
  %v37 = vld [vmem:[%s0 + $0xa8] sm:$0xff]
  %v38 = vld [vmem:[%s0 + $0xb0] sm:$0xff]
  %v39 = vld [vmem:[%s0 + $0xb8] sm:$0xff]
  %v40 = vld [vmem:[%s0 + $0xc0] sm:$0xff]
  %v41 = vld [vmem:[%s0 + $0xc8] sm:$0xff]
  %v42 = vld [vmem:[%s0 + $0xd0] sm:$0xff]
  %v43 = vld [vmem:[%s0 + $0xd8] sm:$0xff]
  %v44 = vld [vmem:[%s0 + $0xe0] sm:$0xff]
  %v45 = vld [vmem:[%s0 + $0xe8] sm:$0xff]
  %v46 = vld [vmem:[%s0 + $0xf0] sm:$0xff]
  %v47 = vld [vmem:[%s0 + $0xf8] sm:$0xff]
  %v48 = vld [vmem:[%s0 + $0x100] sm:$0xff]
  %v49 = vld [vmem:[%s0 + $0x108] sm:$0xff]
  %v50 = vld [vmem:[%s0 + $0x110] sm:$0xff]
  %v51 = vld [vmem:[%s0 + $0x118] sm:$0xff]
  %v52 = vadd.f32 %v16, %v34
  %v53 = vadd.f32 %v17, %v35
  %v54 = vadd.f32 %v18, %v36
  %v55 = vadd.f32 %v19, %v37
  %v56 = vadd.f32 %v20, %v38
  %v57 = vadd.f32 %v21, %v39
  %v58 = vadd.f32 %v22, %v40
  %v59 = vadd.f32 %v23, %v41
  %v60 = vadd.f32 %v24, %v42
  %v61 = vadd.f32 %v25, %v43
  %v62 = vadd.f32 %v26, %v44
  %v63 = vadd.f32 %v27, %v45
  %v64 = vadd.f32 %v28, %v46
  %v65 = vadd.f32 %v29, %v47
  %v66 = vadd.f32 %v30, %v48
  %v67 = vadd.f32 %v31, %v49
  %v68 = vadd.f32 %v32, %v50
  %v69 = vadd.f32 %v33, %v51
  %v70 = vld [vmem:[%s1] sm:$0xff]
  %v71 = vld [vmem:[%s1 + $0x8] sm:$0xff]
  %vm72 = vcmask 130048
  %v74 = vsel %vm72, %v52, 0
  %v77 = vsel %vm72, %v53, 0
  %v80 = vsel %vm72, %v54, 0
  %v83 = vsel %vm72, %v55, 0
  %v86 = vsel %vm72, %v56, 0
  %v89 = vsel %vm72, %v57, 0
  %v92 = vsel %vm72, %v58, 0
  %v95 = vsel %vm72, %v59, 0
  %v98 = vsel %vm72, %v60, 0
  %v101 = vsel %vm72, %v61, 0
  %v104 = vsel %vm72, %v62, 0
  %v107 = vsel %vm72, %v63, 0
  %v110 = vsel %vm72, %v64, 0
  %v113 = vsel %vm72, %v65, 0
  %v116 = vsel %vm72, %v66, 0
  %v119 = vsel %vm72, %v67, 0
  %v122 = vsel %vm72, %v68, 0
  %v125 = vsel %vm72, %v69, 0
  %127 = vmatpush.msra.mxu0 0.0
  %128 = vmatpush.msra.mxu0 0.0
  %129 = vmatpush.msra.mxu0 0.0
  %130 = vmatpush.msra.mxu0 0.0
  %131 = vmatpush.msra.mxu0 0.0
  %132 = vmatpush.msra.mxu0 0.0
  %133 = vmatpush.msra.mxu0 0.0
  %134 = vmatpush.msra.mxu0 0.0
  %135 = vmatpush.msra.mxu0 0.0
  %136 = vmatpush.msra.mxu0 0.0
  %137 = vmatpush.msra.mxu0 0.0
  %138 = vmatpush.msra.mxu0 0.0
  %139 = vmatpush.msra.mxu0 0.0
  %140 = vmatpush.msra.mxu0 0.0
  %141 = vmatpush.msra.mxu0 %v71
  %142 = vmatpush.msra.mxu0 %v70
  %143 = vmatmul.f32.gmra.mxu0 %v74
  %v144 = vpop.f32.mrf.mxu0
  %v145 = vadd.f32 0.0, %v144
  %146 = vmatmul.f32.gmra.mxu0 %v77
  %v147 = vpop.f32.mrf.mxu0
  %v148 = vadd.f32 0.0, %v147
  %149 = vmatmul.f32.gmra.mxu0 %v80
  %v150 = vpop.f32.mrf.mxu0
  %v151 = vadd.f32 0.0, %v150
  %152 = vmatmul.f32.gmra.mxu0 %v83
  %v153 = vpop.f32.mrf.mxu0
  %v154 = vadd.f32 0.0, %v153
  %155 = vmatmul.f32.gmra.mxu0 %v86
  %v156 = vpop.f32.mrf.mxu0
  %v157 = vadd.f32 0.0, %v156
  %158 = vmatmul.f32.gmra.mxu0 %v89
  %v159 = vpop.f32.mrf.mxu0
  %v160 = vadd.f32 0.0, %v159
  %161 = vmatmul.f32.gmra.mxu0 %v92
  %v162 = vpop.f32.mrf.mxu0
  %v163 = vadd.f32 0.0, %v162
  %164 = vmatmul.f32.gmra.mxu0 %v95
  %v165 = vpop.f32.mrf.mxu0
  %v166 = vadd.f32 0.0, %v165
  %167 = vmatmul.f32.gmra.mxu0 %v98
  %v168 = vpop.f32.mrf.mxu0
  %v169 = vadd.f32 0.0, %v168
  %170 = vmatmul.f32.gmra.mxu0 %v101
  %v171 = vpop.f32.mrf.mxu0
  %v172 = vadd.f32 0.0, %v171
  %173 = vmatmul.f32.gmra.mxu0 %v104
  %v174 = vpop.f32.mrf.mxu0
  %v175 = vadd.f32 0.0, %v174
  %176 = vmatmul.f32.gmra.mxu0 %v107
  %v177 = vpop.f32.mrf.mxu0
  %v178 = vadd.f32 0.0, %v177
  %179 = vmatmul.f32.gmra.mxu0 %v110
  %v180 = vpop.f32.mrf.mxu0
  %v181 = vadd.f32 0.0, %v180
  %182 = vmatmul.f32.gmra.mxu0 %v113
  %v183 = vpop.f32.mrf.mxu0
  %v184 = vadd.f32 0.0, %v183
  %185 = vmatmul.f32.gmra.mxu0 %v116
  %v186 = vpop.f32.mrf.mxu0
  %v187 = vadd.f32 0.0, %v186
  %188 = vmatmul.f32.gmra.mxu0 %v119
  %v189 = vpop.f32.mrf.mxu0
  %v190 = vadd.f32 0.0, %v189
  %191 = vmatmul.f32.gmra.mxu0 %v122
  %v192 = vpop.f32.mrf.mxu0
  %v193 = vadd.f32 0.0, %v192
  %194 = vmatmul.f32.gmra.mxu0 %v125
  %v195 = vpop.f32.mrf.mxu0
  %v196 = vadd.f32 0.0, %v195
  %197 = vdwg.mxu0
  %vm198 = vcmask 64512
  %199 = vst.msk [vmem:[%s3] sm:$0xff] %vm198, %v145
  %200 = vst.msk [vmem:[%s3 + $0x8] sm:$0xff] %vm198, %v148
  %201 = vst.msk [vmem:[%s3 + $0x10] sm:$0xff] %vm198, %v151
  %202 = vst.msk [vmem:[%s3 + $0x18] sm:$0xff] %vm198, %v154
  %203 = vst.msk [vmem:[%s3 + $0x20] sm:$0xff] %vm198, %v157
  %204 = vst.msk [vmem:[%s3 + $0x28] sm:$0xff] %vm198, %v160
  %205 = vst.msk [vmem:[%s3 + $0x30] sm:$0xff] %vm198, %v163
  %206 = vst.msk [vmem:[%s3 + $0x38] sm:$0xff] %vm198, %v166
  %207 = vst.msk [vmem:[%s3 + $0x40] sm:$0xff] %vm198, %v169
  %208 = vst.msk [vmem:[%s3 + $0x48] sm:$0xff] %vm198, %v172
  %209 = vst.msk [vmem:[%s3 + $0x50] sm:$0xff] %vm198, %v175
  %210 = vst.msk [vmem:[%s3 + $0x58] sm:$0xff] %vm198, %v178
  %211 = vst.msk [vmem:[%s3 + $0x60] sm:$0xff] %vm198, %v181
  %212 = vst.msk [vmem:[%s3 + $0x68] sm:$0xff] %vm198, %v184
  %213 = vst.msk [vmem:[%s3 + $0x70] sm:$0xff] %vm198, %v187
  %214 = vst.msk [vmem:[%s3 + $0x78] sm:$0xff] %vm198, %v190
  %215 = vst.msk [vmem:[%s3 + $0x80] sm:$0xff] %vm198, %v193
  %216 = vst.msk [vmem:[%s3 + $0x88] sm:$0xff] %vm198, %v196
  %v217 = vld [vmem:[%s3] sm:$0xff]
  %v218 = vld [vmem:[%s3 + $0x8] sm:$0xff]
  %v219 = vld [vmem:[%s3 + $0x10] sm:$0xff]
  %v220 = vld [vmem:[%s3 + $0x18] sm:$0xff]
  %v221 = vld [vmem:[%s3 + $0x20] sm:$0xff]
  %v222 = vld [vmem:[%s3 + $0x28] sm:$0xff]
  %v223 = vld [vmem:[%s3 + $0x30] sm:$0xff]
  %v224 = vld [vmem:[%s3 + $0x38] sm:$0xff]
  %v225 = vld [vmem:[%s3 + $0x40] sm:$0xff]
  %v226 = vld [vmem:[%s3 + $0x48] sm:$0xff]
  %v227 = vld [vmem:[%s3 + $0x50] sm:$0xff]
  %v228 = vld [vmem:[%s3 + $0x58] sm:$0xff]
  %v229 = vld [vmem:[%s3 + $0x60] sm:$0xff]
  %v230 = vld [vmem:[%s3 + $0x68] sm:$0xff]
  %v231 = vld [vmem:[%s3 + $0x70] sm:$0xff]
  %v232 = vld [vmem:[%s3 + $0x78] sm:$0xff]
  %v233 = vld [vmem:[%s3 + $0x80] sm:$0xff]
  %v234 = vld [vmem:[%s3 + $0x88] sm:$0xff]
  %v235 = vadd.f32 %v217, %v226
  %v236 = vadd.f32 %v218, %v227
  %v237 = vadd.f32 %v219, %v228
  %v238 = vadd.f32 %v220, %v229
  %v239 = vadd.f32 %v221, %v230
  %v240 = vadd.f32 %v222, %v231
  %v241 = vadd.f32 %v223, %v232
  %v242 = vadd.f32 %v224, %v233
  %v243 = vadd.f32 %v225, %v234
  %v244 = vld [vmem:[%s2] sm:$0xff]
  %v246 = vsel %vm198, %v235, 0
  %v249 = vsel %vm198, %v236, 0
  %v252 = vsel %vm198, %v237, 0
  %v255 = vsel %vm198, %v238, 0
  %v258 = vsel %vm198, %v239, 0
  %v261 = vsel %vm198, %v240, 0
  %v264 = vsel %vm198, %v241, 0
  %v267 = vsel %vm198, %v242, 0
  %v270 = vsel %vm198, %v243, 0
  %272 = vmatpush.msra.mxu0 0.0
  %273 = vmatpush.msra.mxu0 0.0
  %274 = vmatpush.msra.mxu0 0.0
  %275 = vmatpush.msra.mxu0 0.0
  %276 = vmatpush.msra.mxu0 0.0
  %277 = vmatpush.msra.mxu0 0.0
  %278 = vmatpush.msra.mxu0 0.0
  %279 = vmatpush.msra.mxu0 0.0
  %280 = vmatpush.msra.mxu0 0.0
  %281 = vmatpush.msra.mxu0 0.0
  %282 = vmatpush.msra.mxu0 0.0
  %283 = vmatpush.msra.mxu0 0.0
  %284 = vmatpush.msra.mxu0 0.0
  %285 = vmatpush.msra.mxu0 0.0
  %286 = vmatpush.msra.mxu0 0.0
  %287 = vmatpush.msra.mxu0 %v244
  %288 = vmatmul.f32.gmra.mxu0 %v246
  %v289 = vpop.f32.mrf.mxu0
  %v290 = vadd.f32 0.0, %v289
  %291 = vmatmul.f32.gmra.mxu0 %v249
  %v292 = vpop.f32.mrf.mxu0
  %v293 = vadd.f32 0.0, %v292
  %294 = vmatmul.f32.gmra.mxu0 %v252
  %v295 = vpop.f32.mrf.mxu0
  %v296 = vadd.f32 0.0, %v295
  %297 = vmatmul.f32.gmra.mxu0 %v255
  %v298 = vpop.f32.mrf.mxu0
  %v299 = vadd.f32 0.0, %v298
  %300 = vmatmul.f32.gmra.mxu0 %v258
  %v301 = vpop.f32.mrf.mxu0
  %v302 = vadd.f32 0.0, %v301
  %303 = vmatmul.f32.gmra.mxu0 %v261
  %v304 = vpop.f32.mrf.mxu0
  %v305 = vadd.f32 0.0, %v304
  %306 = vmatmul.f32.gmra.mxu0 %v264
  %v307 = vpop.f32.mrf.mxu0
  %v308 = vadd.f32 0.0, %v307
  %309 = vmatmul.f32.gmra.mxu0 %v267
  %v310 = vpop.f32.mrf.mxu0
  %v311 = vadd.f32 0.0, %v310
  %312 = vmatmul.f32.gmra.mxu0 %v270
  %v313 = vpop.f32.mrf.mxu0
  %v314 = vadd.f32 0.0, %v313
  %315 = vdwg.mxu0
  %vm316 = vcmask 31744
  %317 = vst.msk [vmem:[%s4] sm:$0xff] %vm316, %v290
  %318 = vst.msk [vmem:[%s4 + $0x8] sm:$0xff] %vm316, %v293
  %319 = vst.msk [vmem:[%s4 + $0x10] sm:$0xff] %vm316, %v296
  %320 = vst.msk [vmem:[%s4 + $0x18] sm:$0xff] %vm316, %v299
  %321 = vst.msk [vmem:[%s4 + $0x20] sm:$0xff] %vm316, %v302
  %322 = vst.msk [vmem:[%s4 + $0x28] sm:$0xff] %vm316, %v305
  %323 = vst.msk [vmem:[%s4 + $0x30] sm:$0xff] %vm316, %v308
  %324 = vst.msk [vmem:[%s4 + $0x38] sm:$0xff] %vm316, %v311
  %325 = vst.msk [vmem:[%s4 + $0x40] sm:$0xff] %vm316, %v314
  // Predicated region
  $region14: #{tpu_custom_call.1} parent=0 // pred_check
    _
  $region15: #{tpu_custom_call.1} parent=0 // pred_check_branch
    %327 = sbr.rel (0) target = $region17
  $region16: #{tpu_custom_call.1} parent=0 // pred_region
    _
  $region17: #{tpu_custom_call.1} parent=0 // pred_fallthru
    _
  // Predicated region
  $region18: #{tpu_custom_call.1} parent=0 // pred_check
    _
  $region19: #{tpu_custom_call.1} parent=0 // pred_check_branch
    %329 = sbr.rel (0) target = $region21
  $region20: #{tpu_custom_call.1} parent=0 // pred_region
    _
  $region21: #{tpu_custom_call.1} parent=0 // pred_fallthru
    _
  // Predicated region
  $region22: #{tpu_custom_call.1} parent=0 // pred_check
    _
  $region23: #{tpu_custom_call.1} parent=0 // pred_check_branch
    %331 = sbr.rel (0) target = $region25
  $region24: #{tpu_custom_call.1} parent=0 // pred_region
    _
  $region25: #{tpu_custom_call.1} parent=0 // pred_fallthru
    _
  // Predicated region
  $region26: #{tpu_custom_call.1} parent=0 // pred_check
    _
  $region27: #{tpu_custom_call.1} parent=0 // pred_check_branch
    %333 = sbr.rel (0) target = $region29
  $region28: #{tpu_custom_call.1} parent=0 // pred_region
    _
  $region29: #{tpu_custom_call.1} parent=0 // pred_fallthru
    _

</llo_original>
